<compile_context>
chip_gen: v6e
topology: v6e:2x2x1
jax: 0.10.0
libtpu: 0.0.40
codegen_flags: <defaults>
</compile_context>

<pallas_src>
import numpy as np
import jax
import jax.numpy as jnp
from jax.experimental import pallas as pl
from jax.experimental.pallas import tpu as pltpu


# ---------------------------------------------------------------------------
# Fused Pallas kernel: conv-GEMM + ReLU -> maxpool -> flatten -> fc1 + ReLU -> fc2
# ---------------------------------------------------------------------------

def _net2_fused_kernel(p_ref, wc_ref, bc_ref, w1_ref, b1_ref, w2_ref, b2_ref,
                       o_ref, flat_ref):
    # --- Conv2d(3->12, 3x3, pad=1) + ReLU as one im2col GEMM (bf16 operands, f32 acc) ---
    # p_ref rows are ordered (pool-tap d, hp, wp, n); cols are (c, kh, kw).
    conv = jnp.dot(p_ref[...], wc_ref[...], preferred_element_type=jnp.float32)
    conv = jnp.maximum(conv + bc_ref[...], 0.0)              # (4*Q*N, Cout)

    # --- MaxPool2d(2): max over the 4 pooling taps = 4 static row blocks (all in VMEM) ---
    r = conv.shape[0] // 4                                   # Q*N
    pooled = jnp.maximum(jnp.maximum(conv[0 * r:1 * r], conv[1 * r:2 * r]),
                         jnp.maximum(conv[2 * r:3 * r], conv[3 * r:4 * r]))  # (Q*N, Cout), rows (q, n)

    # --- flatten to (N, Q*Cout) into VMEM scratch; feature order is (hp, wp, c) and the
    #     PyTorch (c, hp, wp) flatten permutation is folded into w1's rows at prep time ---
    n_batch = flat_ref.shape[0]
    c_out = pooled.shape[1]
    q_total = r // n_batch
    for q in range(q_total):                                 # static unroll: 24 tiny VMEM copies
        flat_ref[:, q * c_out:(q + 1) * c_out] = pooled[q * n_batch:(q + 1) * n_batch, :]

    # --- fc1: Linear(288,128) + ReLU, fc2: Linear(128,10) (bf16 dots, f32 accumulate) ---
    h = jnp.dot(flat_ref[...].astype(jnp.bfloat16), w1_ref[...],
                preferred_element_type=jnp.float32) + b1_ref[...]
    h = jnp.maximum(h, 0.0)
    o_ref[...] = jnp.dot(h.astype(jnp.bfloat16), w2_ref[...],
                         preferred_element_type=jnp.float32) + b2_ref[...]


# ---------------------------------------------------------------------------
# Wrapper: single pad + gather for im2col, one pallas_call for everything else
# ---------------------------------------------------------------------------

def _patch_gather_index(N, Cin, H, W, KH=3, KW=3):
    """Constant index map: rows (pool-tap d, hp, wp, n), cols (c, kh, kw) -> flat padded-input index."""
    Hp, Wp = H // 2, W // 2
    Hpad, Wpad = H + 2, W + 2
    D, HPi, WPi, Ni, Ci, KHi, KWi = np.indices((4, Hp, Wp, N, Cin, KH, KW))
    ph, pw = D // 2, D % 2
    hi = 2 * HPi + ph + KHi                                  # row into padded input
    wi = 2 * WPi + pw + KWi
    idx = ((Ni * Cin + Ci) * Hpad + hi) * Wpad + wi
    return idx.reshape(4 * Hp * Wp * N, Cin * KH * KW).astype(np.int32)


def net2_forward(x, prepared):
    """x: (N, 3, H, W) float32 NCHW. Returns (N, 10) float32."""
    wcm, bc, w1p, b1, w2, b2 = prepared
    N, Cin, H, W = x.shape
    Cout = wcm.shape[1]
    Hp, Wp = H // 2, W // 2
    Q = Hp * Wp
    assert Cout * Q == w1p.shape[0], "fc1 in_features must equal Cout*Hp*Wp"

    # im2col as a single pad + constant-index gather (bf16 -> half-width patch DMA).
    xpad = jnp.pad(x, ((0, 0), (0, 0), (1, 1), (1, 1))).astype(jnp.bfloat16).reshape(-1)
    idx = jnp.asarray(_patch_gather_index(N, Cin, H, W))
    patches = jnp.take(xpad, idx, axis=0)                    # (4*Q*N, Cin*9) bf16

    vmem_specs = [pl.BlockSpec(memory_space=pltpu.MemorySpace.VMEM) for _ in range(7)]
    return pl.pallas_call(
        _net2_fused_kernel,
        out_shape=jax.ShapeDtypeStruct((N, w2.shape[1]), jnp.float32),
        in_specs=vmem_specs,
        out_specs=pl.BlockSpec(memory_space=pltpu.MemorySpace.VMEM),
        scratch_shapes=[pltpu.VMEM((N, Cout * Q), jnp.float32)],   # flattened features
    )(patches, wcm, bc, w1p, b1, w2, b2)


# ---------------------------------------------------------------------------
# Parameters (PyTorch-layout) + one-time kernel-layout preparation
# ---------------------------------------------------------------------------

def init_params(key):
    ks = jax.random.split(key, 6)
    wc = jax.random.normal(ks[0], (12, 3, 3, 3), jnp.float32) * 0.1   # Conv2d weight (O,I,kh,kw)
    bc = jax.random.normal(ks[1], (12,), jnp.float32) * 0.1
    w1 = jax.random.normal(ks[2], (288, 128), jnp.float32) * 0.05     # Linear(288,128), stored (in,out)
    b1 = jax.random.normal(ks[3], (128,), jnp.float32) * 0.05
    w2 = jax.random.normal(ks[4], (128, 10), jnp.float32) * 0.05      # Linear(128,10), stored (in,out)
    b2 = jax.random.normal(ks[5], (10,), jnp.float32) * 0.05
    return (wc, bc, w1, b1, w2, b2)


def prepare_params(params):
    """One-time layout prep: fold all permutations/reshapes/casts into the weights."""
    wc, bc, w1, b1, w2, b2 = params
    Cout = wc.shape[0]
    wcm = wc.reshape(Cout, -1).T.astype(jnp.bfloat16)        # (27, 12), rows ordered (c, kh, kw)
    Q = w1.shape[0] // Cout                                  # 24 pooled spatial positions
    # PyTorch flatten order is (c, hp, wp); kernel produces (hp, wp, c) -> permute w1 rows once.
    w1p = (w1.reshape(Cout, Q, -1).transpose(1, 0, 2)
             .reshape(Cout * Q, -1)).astype(jnp.bfloat16)
    return (wcm,
            bc.reshape(1, Cout).astype(jnp.float32),
            w1p,
            b1.reshape(1, -1).astype(jnp.float32),
            w2.astype(jnp.bfloat16),
            b2.reshape(1, -1).astype(jnp.float32))


# ---------------------------------------------------------------------------
# Pure-JAX reference (PyTorch semantics) + smoke test
# ---------------------------------------------------------------------------

def net2_reference(x, params):
    wc, bc, w1, b1, w2, b2 = params
    conv = jax.lax.conv_general_dilated(
        x, wc, window_strides=(1, 1), padding=((1, 1), (1, 1)),
        dimension_numbers=("NCHW", "OIHW", "NCHW")) + bc[None, :, None, None]
    conv = jnp.maximum(conv, 0.0)
    N, C, H, W = conv.shape
    pooled = conv.reshape(N, C, H // 2, 2, W // 2, 2).max(axis=(3, 5))
    flat = pooled.reshape(N, -1)                              # PyTorch .view(N, -1): (c, hp, wp) order
    h = jnp.maximum(flat @ w1 + b1, 0.0)
    return h @ w2 + b2


if __name__ == "__main__":
    key = jax.random.PRNGKey(0)
    k_x, k_p = jax.random.split(key)
    # NCHW input; spatial (8, 12) so the flattened pooled features == 288 as fc1 requires.
    x = jax.random.normal(k_x, (2, 3, 8, 12), jnp.float32)
    params = init_params(k_p)
    prepared = prepare_params(params)

    out = jax.jit(net2_forward)(x, prepared)
    out = jax.block_until_ready(out)
    assert out.shape == (2, 10) and out.dtype == jnp.float32

    ref = net2_reference(x, params)
    err = float(jnp.max(jnp.abs(out - ref)))
    assert err < 1e-1, f"mismatch vs reference: max abs err {err}"

    print("KERNEL_OK")
</pallas_src>

<mosaic_0001>
module attributes {stable_mosaic.version = 11 : i64} {
  func.func @_net2_fused_kernel(%arg0: memref<192x27xbf16, #tpu.memory_space<vmem>>, %arg1: memref<27x12xbf16, #tpu.memory_space<vmem>>, %arg2: memref<1x12xf32, #tpu.memory_space<vmem>>, %arg3: memref<288x128xbf16, #tpu.memory_space<vmem>>, %arg4: memref<1x128xf32, #tpu.memory_space<vmem>>, %arg5: memref<128x10xbf16, #tpu.memory_space<vmem>>, %arg6: memref<1x10xf32, #tpu.memory_space<vmem>>, %arg7: memref<2x10xf32, #tpu.memory_space<vmem>>, %arg8: memref<2x288xf32, #tpu.memory_space<vmem>>) attributes {dimension_semantics = [], scalar_prefetch = 0 : i64, scratch_operands = 1 : i64, tpu.core_type = #tpu.core_type<tc>} {
    %c0 = arith.constant 0 : index
    %c0_0 = arith.constant 0 : index
    %0 = vector.load %arg0[%c0, %c0_0] : memref<192x27xbf16, #tpu.memory_space<vmem>>, vector<192x27xbf16>
    %c0_1 = arith.constant 0 : index
    %c0_2 = arith.constant 0 : index
    %1 = vector.load %arg1[%c0_1, %c0_2] : memref<27x12xbf16, #tpu.memory_space<vmem>>, vector<27x12xbf16>
    %cst = arith.constant dense<0.000000e+00> : vector<192x12xf32>
    %2 = tpu.matmul %0, %1, %cst {dimension_numbers = #tpu.dot_dimension_numbers<[1], [0], [0], [1], [0, 0, 1, 1], [], []>} : vector<192x27xbf16>, vector<27x12xbf16>, vector<192x12xf32> -> vector<192x12xf32>
    %c0_3 = arith.constant 0 : index
    %c0_4 = arith.constant 0 : index
    %3 = vector.load %arg2[%c0_3, %c0_4] : memref<1x12xf32, #tpu.memory_space<vmem>>, vector<1x12xf32>
    %4 = vector.broadcast %3 : vector<1x12xf32> to vector<192x12xf32>
    %5 = arith.addf %2, %4 : vector<192x12xf32>
    %cst_5 = arith.constant 0.000000e+00 : f32
    %6 = vector.broadcast %cst_5 : f32 to vector<192x12xf32>
    %7 = arith.maximumf %5, %6 : vector<192x12xf32>
    %8 = vector.extract_strided_slice %7 {offsets = [0, 0], sizes = [48, 12], strides = [1, 1]} : vector<192x12xf32> to vector<48x12xf32>
    %9 = vector.extract_strided_slice %7 {offsets = [48, 0], sizes = [48, 12], strides = [1, 1]} : vector<192x12xf32> to vector<48x12xf32>
    %10 = arith.maximumf %8, %9 : vector<48x12xf32>
    %11 = vector.extract_strided_slice %7 {offsets = [96, 0], sizes = [48, 12], strides = [1, 1]} : vector<192x12xf32> to vector<48x12xf32>
    %12 = vector.extract_strided_slice %7 {offsets = [144, 0], sizes = [48, 12], strides = [1, 1]} : vector<192x12xf32> to vector<48x12xf32>
    %13 = arith.maximumf %11, %12 : vector<48x12xf32>
    %14 = arith.maximumf %10, %13 : vector<48x12xf32>
    %15 = vector.extract_strided_slice %14 {offsets = [0, 0], sizes = [2, 12], strides = [1, 1]} : vector<48x12xf32> to vector<2x12xf32>
    %c0_6 = arith.constant 0 : index
    %c0_7 = arith.constant 0 : index
    %16 = vector.load %arg8[%c0_6, %c0_7] : memref<2x288xf32, #tpu.memory_space<vmem>>, vector<2x12xf32>
    tpu.vector_store %arg8[%c0_6, %c0_7], %15 {strides = array<i32>} : memref<2x288xf32, #tpu.memory_space<vmem>>, vector<2x12xf32>,
    %17 = vector.extract_strided_slice %14 {offsets = [2, 0], sizes = [2, 12], strides = [1, 1]} : vector<48x12xf32> to vector<2x12xf32>
    %c0_8 = arith.constant 0 : index
    %c12 = arith.constant 12 : index
    %18 = vector.load %arg8[%c0_8, %c12] : memref<2x288xf32, #tpu.memory_space<vmem>>, vector<2x12xf32>
    tpu.vector_store %arg8[%c0_8, %c12], %17 {strides = array<i32>} : memref<2x288xf32, #tpu.memory_space<vmem>>, vector<2x12xf32>,
    %19 = vector.extract_strided_slice %14 {offsets = [4, 0], sizes = [2, 12], strides = [1, 1]} : vector<48x12xf32> to vector<2x12xf32>
    %c0_9 = arith.constant 0 : index
    %c24 = arith.constant 24 : index
    %20 = vector.load %arg8[%c0_9, %c24] : memref<2x288xf32, #tpu.memory_space<vmem>>, vector<2x12xf32>
    tpu.vector_store %arg8[%c0_9, %c24], %19 {strides = array<i32>} : memref<2x288xf32, #tpu.memory_space<vmem>>, vector<2x12xf32>,
    %21 = vector.extract_strided_slice %14 {offsets = [6, 0], sizes = [2, 12], strides = [1, 1]} : vector<48x12xf32> to vector<2x12xf32>
    %c0_10 = arith.constant 0 : index
    %c36 = arith.constant 36 : index
    %22 = vector.load %arg8[%c0_10, %c36] : memref<2x288xf32, #tpu.memory_space<vmem>>, vector<2x12xf32>
    tpu.vector_store %arg8[%c0_10, %c36], %21 {strides = array<i32>} : memref<2x288xf32, #tpu.memory_space<vmem>>, vector<2x12xf32>,
    %23 = vector.extract_strided_slice %14 {offsets = [8, 0], sizes = [2, 12], strides = [1, 1]} : vector<48x12xf32> to vector<2x12xf32>
    %c0_11 = arith.constant 0 : index
    %c48 = arith.constant 48 : index
    %24 = vector.load %arg8[%c0_11, %c48] : memref<2x288xf32, #tpu.memory_space<vmem>>, vector<2x12xf32>
    tpu.vector_store %arg8[%c0_11, %c48], %23 {strides = array<i32>} : memref<2x288xf32, #tpu.memory_space<vmem>>, vector<2x12xf32>,
    %25 = vector.extract_strided_slice %14 {offsets = [10, 0], sizes = [2, 12], strides = [1, 1]} : vector<48x12xf32> to vector<2x12xf32>
    %c0_12 = arith.constant 0 : index
    %c60 = arith.constant 60 : index
    %26 = vector.load %arg8[%c0_12, %c60] : memref<2x288xf32, #tpu.memory_space<vmem>>, vector<2x12xf32>
    tpu.vector_store %arg8[%c0_12, %c60], %25 {strides = array<i32>} : memref<2x288xf32, #tpu.memory_space<vmem>>, vector<2x12xf32>,
    %27 = vector.extract_strided_slice %14 {offsets = [12, 0], sizes = [2, 12], strides = [1, 1]} : vector<48x12xf32> to vector<2x12xf32>
    %c0_13 = arith.constant 0 : index
    %c72 = arith.constant 72 : index
    %28 = vector.load %arg8[%c0_13, %c72] : memref<2x288xf32, #tpu.memory_space<vmem>>, vector<2x12xf32>
    tpu.vector_store %arg8[%c0_13, %c72], %27 {strides = array<i32>} : memref<2x288xf32, #tpu.memory_space<vmem>>, vector<2x12xf32>,
    %29 = vector.extract_strided_slice %14 {offsets = [14, 0], sizes = [2, 12], strides = [1, 1]} : vector<48x12xf32> to vector<2x12xf32>
    %c0_14 = arith.constant 0 : index
    %c84 = arith.constant 84 : index
    %30 = vector.load %arg8[%c0_14, %c84] : memref<2x288xf32, #tpu.memory_space<vmem>>, vector<2x12xf32>
    tpu.vector_store %arg8[%c0_14, %c84], %29 {strides = array<i32>} : memref<2x288xf32, #tpu.memory_space<vmem>>, vector<2x12xf32>,
    %31 = vector.extract_strided_slice %14 {offsets = [16, 0], sizes = [2, 12], strides = [1, 1]} : vector<48x12xf32> to vector<2x12xf32>
    %c0_15 = arith.constant 0 : index
    %c96 = arith.constant 96 : index
    %32 = vector.load %arg8[%c0_15, %c96] : memref<2x288xf32, #tpu.memory_space<vmem>>, vector<2x12xf32>
    tpu.vector_store %arg8[%c0_15, %c96], %31 {strides = array<i32>} : memref<2x288xf32, #tpu.memory_space<vmem>>, vector<2x12xf32>,
    %33 = vector.extract_strided_slice %14 {offsets = [18, 0], sizes = [2, 12], strides = [1, 1]} : vector<48x12xf32> to vector<2x12xf32>
    %c0_16 = arith.constant 0 : index
    %c108 = arith.constant 108 : index
    %34 = vector.load %arg8[%c0_16, %c108] : memref<2x288xf32, #tpu.memory_space<vmem>>, vector<2x12xf32>
    tpu.vector_store %arg8[%c0_16, %c108], %33 {strides = array<i32>} : memref<2x288xf32, #tpu.memory_space<vmem>>, vector<2x12xf32>,
    %35 = vector.extract_strided_slice %14 {offsets = [20, 0], sizes = [2, 12], strides = [1, 1]} : vector<48x12xf32> to vector<2x12xf32>
    %c0_17 = arith.constant 0 : index
    %c120 = arith.constant 120 : index
    %36 = vector.load %arg8[%c0_17, %c120] : memref<2x288xf32, #tpu.memory_space<vmem>>, vector<2x12xf32>
    tpu.vector_store %arg8[%c0_17, %c120], %35 {strides = array<i32>} : memref<2x288xf32, #tpu.memory_space<vmem>>, vector<2x12xf32>,
    %37 = vector.extract_strided_slice %14 {offsets = [22, 0], sizes = [2, 12], strides = [1, 1]} : vector<48x12xf32> to vector<2x12xf32>
    %c0_18 = arith.constant 0 : index
    %c132 = arith.constant 132 : index
    %38 = vector.load %arg8[%c0_18, %c132] : memref<2x288xf32, #tpu.memory_space<vmem>>, vector<2x12xf32>
    tpu.vector_store %arg8[%c0_18, %c132], %37 {strides = array<i32>} : memref<2x288xf32, #tpu.memory_space<vmem>>, vector<2x12xf32>,
    %39 = vector.extract_strided_slice %14 {offsets = [24, 0], sizes = [2, 12], strides = [1, 1]} : vector<48x12xf32> to vector<2x12xf32>
    %c0_19 = arith.constant 0 : index
    %c144 = arith.constant 144 : index
    %40 = vector.load %arg8[%c0_19, %c144] : memref<2x288xf32, #tpu.memory_space<vmem>>, vector<2x12xf32>
    tpu.vector_store %arg8[%c0_19, %c144], %39 {strides = array<i32>} : memref<2x288xf32, #tpu.memory_space<vmem>>, vector<2x12xf32>,
    %41 = vector.extract_strided_slice %14 {offsets = [26, 0], sizes = [2, 12], strides = [1, 1]} : vector<48x12xf32> to vector<2x12xf32>
    %c0_20 = arith.constant 0 : index
    %c156 = arith.constant 156 : index
    %42 = vector.load %arg8[%c0_20, %c156] : memref<2x288xf32, #tpu.memory_space<vmem>>, vector<2x12xf32>
    tpu.vector_store %arg8[%c0_20, %c156], %41 {strides = array<i32>} : memref<2x288xf32, #tpu.memory_space<vmem>>, vector<2x12xf32>,
    %43 = vector.extract_strided_slice %14 {offsets = [28, 0], sizes = [2, 12], strides = [1, 1]} : vector<48x12xf32> to vector<2x12xf32>
    %c0_21 = arith.constant 0 : index
    %c168 = arith.constant 168 : index
    %44 = vector.load %arg8[%c0_21, %c168] : memref<2x288xf32, #tpu.memory_space<vmem>>, vector<2x12xf32>
    tpu.vector_store %arg8[%c0_21, %c168], %43 {strides = array<i32>} : memref<2x288xf32, #tpu.memory_space<vmem>>, vector<2x12xf32>,
    %45 = vector.extract_strided_slice %14 {offsets = [30, 0], sizes = [2, 12], strides = [1, 1]} : vector<48x12xf32> to vector<2x12xf32>
    %c0_22 = arith.constant 0 : index
    %c180 = arith.constant 180 : index
    %46 = vector.load %arg8[%c0_22, %c180] : memref<2x288xf32, #tpu.memory_space<vmem>>, vector<2x12xf32>
    tpu.vector_store %arg8[%c0_22, %c180], %45 {strides = array<i32>} : memref<2x288xf32, #tpu.memory_space<vmem>>, vector<2x12xf32>,
    %47 = vector.extract_strided_slice %14 {offsets = [32, 0], sizes = [2, 12], strides = [1, 1]} : vector<48x12xf32> to vector<2x12xf32>
    %c0_23 = arith.constant 0 : index
    %c192 = arith.constant 192 : index
    %48 = vector.load %arg8[%c0_23, %c192] : memref<2x288xf32, #tpu.memory_space<vmem>>, vector<2x12xf32>
    tpu.vector_store %arg8[%c0_23, %c192], %47 {strides = array<i32>} : memref<2x288xf32, #tpu.memory_space<vmem>>, vector<2x12xf32>,
    %49 = vector.extract_strided_slice %14 {offsets = [34, 0], sizes = [2, 12], strides = [1, 1]} : vector<48x12xf32> to vector<2x12xf32>
    %c0_24 = arith.constant 0 : index
    %c204 = arith.constant 204 : index
    %50 = vector.load %arg8[%c0_24, %c204] : memref<2x288xf32, #tpu.memory_space<vmem>>, vector<2x12xf32>
    tpu.vector_store %arg8[%c0_24, %c204], %49 {strides = array<i32>} : memref<2x288xf32, #tpu.memory_space<vmem>>, vector<2x12xf32>,
    %51 = vector.extract_strided_slice %14 {offsets = [36, 0], sizes = [2, 12], strides = [1, 1]} : vector<48x12xf32> to vector<2x12xf32>
    %c0_25 = arith.constant 0 : index
    %c216 = arith.constant 216 : index
    %52 = vector.load %arg8[%c0_25, %c216] : memref<2x288xf32, #tpu.memory_space<vmem>>, vector<2x12xf32>
    tpu.vector_store %arg8[%c0_25, %c216], %51 {strides = array<i32>} : memref<2x288xf32, #tpu.memory_space<vmem>>, vector<2x12xf32>,
    %53 = vector.extract_strided_slice %14 {offsets = [38, 0], sizes = [2, 12], strides = [1, 1]} : vector<48x12xf32> to vector<2x12xf32>
    %c0_26 = arith.constant 0 : index
    %c228 = arith.constant 228 : index
    %54 = vector.load %arg8[%c0_26, %c228] : memref<2x288xf32, #tpu.memory_space<vmem>>, vector<2x12xf32>
    tpu.vector_store %arg8[%c0_26, %c228], %53 {strides = array<i32>} : memref<2x288xf32, #tpu.memory_space<vmem>>, vector<2x12xf32>,
    %55 = vector.extract_strided_slice %14 {offsets = [40, 0], sizes = [2, 12], strides = [1, 1]} : vector<48x12xf32> to vector<2x12xf32>
    %c0_27 = arith.constant 0 : index
    %c240 = arith.constant 240 : index
    %56 = vector.load %arg8[%c0_27, %c240] : memref<2x288xf32, #tpu.memory_space<vmem>>, vector<2x12xf32>
    tpu.vector_store %arg8[%c0_27, %c240], %55 {strides = array<i32>} : memref<2x288xf32, #tpu.memory_space<vmem>>, vector<2x12xf32>,
    %57 = vector.extract_strided_slice %14 {offsets = [42, 0], sizes = [2, 12], strides = [1, 1]} : vector<48x12xf32> to vector<2x12xf32>
    %c0_28 = arith.constant 0 : index
    %c252 = arith.constant 252 : index
    %58 = vector.load %arg8[%c0_28, %c252] : memref<2x288xf32, #tpu.memory_space<vmem>>, vector<2x12xf32>
    tpu.vector_store %arg8[%c0_28, %c252], %57 {strides = array<i32>} : memref<2x288xf32, #tpu.memory_space<vmem>>, vector<2x12xf32>,
    %59 = vector.extract_strided_slice %14 {offsets = [44, 0], sizes = [2, 12], strides = [1, 1]} : vector<48x12xf32> to vector<2x12xf32>
    %c0_29 = arith.constant 0 : index
    %c264 = arith.constant 264 : index
    %60 = vector.load %arg8[%c0_29, %c264] : memref<2x288xf32, #tpu.memory_space<vmem>>, vector<2x12xf32>
    tpu.vector_store %arg8[%c0_29, %c264], %59 {strides = array<i32>} : memref<2x288xf32, #tpu.memory_space<vmem>>, vector<2x12xf32>,
    %61 = vector.extract_strided_slice %14 {offsets = [46, 0], sizes = [2, 12], strides = [1, 1]} : vector<48x12xf32> to vector<2x12xf32>
    %c0_30 = arith.constant 0 : index
    %c276 = arith.constant 276 : index
    %62 = vector.load %arg8[%c0_30, %c276] : memref<2x288xf32, #tpu.memory_space<vmem>>, vector<2x12xf32>
    tpu.vector_store %arg8[%c0_30, %c276], %61 {strides = array<i32>} : memref<2x288xf32, #tpu.memory_space<vmem>>, vector<2x12xf32>,
    %c0_31 = arith.constant 0 : index
    %c0_32 = arith.constant 0 : index
    %63 = vector.load %arg8[%c0_31, %c0_32] : memref<2x288xf32, #tpu.memory_space<vmem>>, vector<2x288xf32>
    %64 = arith.truncf %63 : vector<2x288xf32> to vector<2x288xbf16>
    %c0_33 = arith.constant 0 : index
    %c0_34 = arith.constant 0 : index
    %65 = vector.load %arg3[%c0_33, %c0_34] : memref<288x128xbf16, #tpu.memory_space<vmem>>, vector<288x128xbf16>
    %cst_35 = arith.constant dense<0.000000e+00> : vector<2x128xf32>
    %66 = tpu.matmul %64, %65, %cst_35 {dimension_numbers = #tpu.dot_dimension_numbers<[1], [0], [0], [1], [0, 0, 1, 1], [], []>} : vector<2x288xbf16>, vector<288x128xbf16>, vector<2x128xf32> -> vector<2x128xf32>
    %c0_36 = arith.constant 0 : index
    %c0_37 = arith.constant 0 : index
    %67 = vector.load %arg4[%c0_36, %c0_37] : memref<1x128xf32, #tpu.memory_space<vmem>>, vector<1x128xf32>
    %68 = vector.broadcast %67 : vector<1x128xf32> to vector<2x128xf32>
    %69 = arith.addf %66, %68 : vector<2x128xf32>
    %cst_38 = arith.constant 0.000000e+00 : f32
    %70 = vector.broadcast %cst_38 : f32 to vector<2x128xf32>
    %71 = arith.maximumf %69, %70 : vector<2x128xf32>
    %72 = arith.truncf %71 : vector<2x128xf32> to vector<2x128xbf16>
    %c0_39 = arith.constant 0 : index
    %c0_40 = arith.constant 0 : index
    %73 = vector.load %arg5[%c0_39, %c0_40] : memref<128x10xbf16, #tpu.memory_space<vmem>>, vector<128x10xbf16>
    %cst_41 = arith.constant dense<0.000000e+00> : vector<2x10xf32>
    %74 = tpu.matmul %72, %73, %cst_41 {dimension_numbers = #tpu.dot_dimension_numbers<[1], [0], [0], [1], [0, 0, 1, 1], [], []>} : vector<2x128xbf16>, vector<128x10xbf16>, vector<2x10xf32> -> vector<2x10xf32>
    %c0_42 = arith.constant 0 : index
    %c0_43 = arith.constant 0 : index
    %75 = vector.load %arg6[%c0_42, %c0_43] : memref<1x10xf32, #tpu.memory_space<vmem>>, vector<1x10xf32>
    %76 = vector.broadcast %75 : vector<1x10xf32> to vector<2x10xf32>
    %77 = arith.addf %74, %76 : vector<2x10xf32>
    %c0_44 = arith.constant 0 : index
    %c0_45 = arith.constant 0 : index
    %78 = vector.load %arg7[%c0_44, %c0_45] : memref<2x10xf32, #tpu.memory_space<vmem>>, vector<2x10xf32>
    tpu.vector_store %arg7[%c0_44, %c0_45], %77 {strides = array<i32>} : memref<2x10xf32, #tpu.memory_space<vmem>>, vector<2x10xf32>,
    return
  }
}

</mosaic_0001>

<llo_original>
// kernel: net2_forward.1
$region0: #{net2_forward.1}
  #allocation0 [shape = 'u32[]', space=smem, size = 0x4, offset = 0x4, fixed_abs, tag = 'smem constant byte address 0x4 - core index']
  #allocation1 [shape = 'u32[144,128]{1,0:T(1,128)}', space=vmem, size = 0x12000, scoped, tag = 'internal scratch']
  #allocation2 [shape = 'f32[2,288]{1,0:T(2,128)}', space=vmem, size = 0xc00, scoped, tag = 'scratch operand']
  %s0 = inlined_call_operand.vmem [shape: bf16[192,27], index: 0, kind: input, shape index: {}]
  %s1 = inlined_call_operand.vmem [shape: bf16[27,12], index: 1, kind: input, shape index: {}]
  %s2 = inlined_call_operand.vmem [shape: f32[1,12], index: 2, kind: input, shape index: {}]
  %s3 = inlined_call_operand.vmem [shape: bf16[288,128], index: 3, kind: input, shape index: {}]
  %s4 = inlined_call_operand.vmem [shape: f32[1,128], index: 4, kind: input, shape index: {}]
  %s5 = inlined_call_operand.vmem [shape: bf16[128,10], index: 5, kind: input, shape index: {}]
  %s6 = inlined_call_operand.vmem [shape: f32[1,10], index: 6, kind: input, shape index: {}]
  %s7 = inlined_call_operand.hbm [shape: f32[2,10], index: 7, kind: output, shape index: {}]
  %s8 = sld [smem:[#allocation0]]
  $region38: #{net2_forward.1} parent=0
    _
  %s10 = ssub.s32 1, %s8
  %s11 = scalar_select 0, %s10, %s8
  $region1: #{net2_forward.1} parent=0
    #allocation3 [shape = 'u8[1024]{0}', space=vmem, size = 0x400, scoped, tag = 'output window, operand 0, single buffered']
    #allocation4 [shape = 's32[1]{0}', space=sflag, size = 0x4, scoped, tag = 'scoped memory for net2_forward.1']
    %12 = vsyncpa [#allocation4], 0
    // Predicated region
    $region2: #{net2_forward.1} parent=1 // pred_check
      _
    $region3: #{net2_forward.1} parent=1 // pred_check_branch
      %14 = sbr.rel (0) target = $region5
    $region4: #{net2_forward.1} parent=1 // pred_region
      _
    $region5: #{net2_forward.1} parent=1 // pred_fallthru
      _
    // Predicated region
    $region6: #{net2_forward.1} parent=1 // pred_check
      _
    $region7: #{net2_forward.1} parent=1 // pred_check_branch
      %16 = sbr.rel (0) target = $region9
    $region8: #{net2_forward.1} parent=1 // pred_region
      _
    $region9: #{net2_forward.1} parent=1 // pred_fallthru
      _
    // Predicated region
    $region10: #{net2_forward.1} parent=1 // pred_check
      _
    $region11: #{net2_forward.1} parent=1 // pred_check_branch
      %18 = sbr.rel (0) target = $region13
    $region12: #{net2_forward.1} parent=1 // pred_region
      _
    $region13: #{net2_forward.1} parent=1 // pred_fallthru
      _
    // Predicated region
    $region14: #{net2_forward.1} parent=1 // pred_check
      _
    $region15: #{net2_forward.1} parent=1 // pred_check_branch
      %20 = sbr.rel (0) target = $region17
    $region16: #{net2_forward.1} parent=1 // pred_region
      _
    $region17: #{net2_forward.1} parent=1 // pred_fallthru
      _
    // Predicated region
    $region18: #{net2_forward.1} parent=1 // pred_check
      _
    $region19: #{net2_forward.1} parent=1 // pred_check_branch
      %22 = sbr.rel (0) target = $region21
    $region20: #{net2_forward.1} parent=1 // pred_region
      _
    $region21: #{net2_forward.1} parent=1 // pred_fallthru
      _
    // Predicated region
    $region22: #{net2_forward.1} parent=1 // pred_check
      _
    $region23: #{net2_forward.1} parent=1 // pred_check_branch
      %24 = sbr.rel (0) target = $region25
    $region24: #{net2_forward.1} parent=1 // pred_region
      _
    $region25: #{net2_forward.1} parent=1 // pred_fallthru
      _
    // Predicated region
    $region26: #{net2_forward.1} parent=1 // pred_check
      _
    $region27: #{net2_forward.1} parent=1 // pred_check_branch
      %26 = sbr.rel (0) target = $region29
    $region28: #{net2_forward.1} parent=1 // pred_region
      _
    $region29: #{net2_forward.1} parent=1 // pred_fallthru
      _
    %v28 = vld [vmem:[%s0] sm:$0xf]
    %v29 = vld [vmem:[%s0 + $0x4] sm:$0xf]
    %v30 = vld [vmem:[%s0 + $0x8] sm:$0xf]
    %v31 = vld [vmem:[%s0 + $0xc] sm:$0xf]
    %v32 = vld [vmem:[%s0 + $0x10] sm:$0xf]
    %v33 = vld [vmem:[%s0 + $0x14] sm:$0xf]
    %v34 = vld [vmem:[%s0 + $0x18] sm:$0xf]
    %v35 = vld [vmem:[%s0 + $0x1c] sm:$0xf]
    %v36 = vld [vmem:[%s0 + $0x20] sm:$0xf]
    %v37 = vld [vmem:[%s0 + $0x24] sm:$0xf]
    %v38 = vld [vmem:[%s0 + $0x28] sm:$0xf]
    %v39 = vld [vmem:[%s0 + $0x2c] sm:$0xf]
    %v40 = vld [vmem:[%s0 + $0x30] sm:$0xf]
    %v41 = vld [vmem:[%s0 + $0x34] sm:$0xf]
    %v42 = vld [vmem:[%s0 + $0x38] sm:$0xf]
    %v43 = vld [vmem:[%s0 + $0x3c] sm:$0xf]
    %v44 = vld [vmem:[%s0 + $0x40] sm:$0xf]
    %v45 = vld [vmem:[%s0 + $0x44] sm:$0xf]
    %v46 = vld [vmem:[%s0 + $0x48] sm:$0xf]
    %v47 = vld [vmem:[%s0 + $0x4c] sm:$0xf]
    %v48 = vld [vmem:[%s0 + $0x50] sm:$0xf]
    %v49 = vld [vmem:[%s0 + $0x54] sm:$0xf]
    %v50 = vld [vmem:[%s0 + $0x58] sm:$0xf]
    %v51 = vld [vmem:[%s0 + $0x5c] sm:$0xf]
    %v52 = vld [vmem:[%s1] sm:$0xf]
    %v53 = vld [vmem:[%s1 + $0x4] sm:$0xf]
    %v54 = vld [vmem:[%s1 + $0x8] sm:$0xf]
    %v55 = vld [vmem:[%s1 + $0xc] sm:$0x3]
    %v56 = vld [vmem:[%s2] sm:$0x1]
    %v58 = vlaneseq
    %v59 = vshrl.u32 %v58, 7
    %v60 = vsub.s32 0, %v59
    %v61 = vrot.slane %v56, %v60
    %v87 = vunpack.c.l.b16 %v28
    %v88 = vunpack.c.l.b16 %v29
    %v89 = vunpack.c.l.b16 %v30
    %v90 = vunpack.c.l.b16 %v31
    %v91 = vunpack.c.l.b16 %v32
    %v92 = vunpack.c.l.b16 %v33
    %v93 = vunpack.c.l.b16 %v34
    %v94 = vunpack.c.l.b16 %v35
    %v95 = vunpack.c.l.b16 %v36
    %v96 = vunpack.c.l.b16 %v37
    %v97 = vunpack.c.l.b16 %v38
    %v98 = vunpack.c.l.b16 %v39
    %v99 = vunpack.c.l.b16 %v40
    %v100 = vunpack.c.l.b16 %v41
    %v101 = vunpack.c.l.b16 %v42
    %v102 = vunpack.c.l.b16 %v43
    %v103 = vunpack.c.l.b16 %v44
    %v104 = vunpack.c.l.b16 %v45
    %v105 = vunpack.c.l.b16 %v46
    %v106 = vunpack.c.l.b16 %v47
    %v107 = vunpack.c.l.b16 %v48
    %v108 = vunpack.c.l.b16 %v49
    %v109 = vunpack.c.l.b16 %v50
    %v110 = vunpack.c.l.b16 %v51
    %v111 = vpack.c.b16 %v88, %v87
    %v112 = vpack.c.b16 %v90, %v89
    %v113 = vpack.c.b16 %v92, %v91
    %v114 = vpack.c.b16 %v94, %v93
    %v115 = vpack.c.b16 %v96, %v95
    %v116 = vpack.c.b16 %v98, %v97
    %v117 = vpack.c.b16 %v100, %v99
    %v118 = vpack.c.b16 %v102, %v101
    %v119 = vpack.c.b16 %v104, %v103
    %v120 = vpack.c.b16 %v106, %v105
    %v121 = vpack.c.b16 %v108, %v107
    %v122 = vpack.c.b16 %v110, %v109
    %v127 = vunpack.c.l.b16 %v52
    %v128 = vunpack.c.l.b16 %v53
    %v129 = vunpack.c.l.b16 %v54
    %v130 = vunpack.c.l.b16 %v55
    %v131 = vpack.c.b16 %v128, %v127
    %v132 = vpack.c.b16 %v130, %v129
    %vm134 = vcmask 220160
    %v136 = vsel %vm134, %v111, 0
    %v139 = vsel %vm134, %v112, 0
    %v142 = vsel %vm134, %v113, 0
    %v145 = vsel %vm134, %v114, 0
    %v148 = vsel %vm134, %v115, 0
    %v151 = vsel %vm134, %v116, 0
    %v154 = vsel %vm134, %v117, 0
    %v157 = vsel %vm134, %v118, 0
    %v160 = vsel %vm134, %v119, 0
    %v163 = vsel %vm134, %v120, 0
    %v166 = vsel %vm134, %v121, 0
    %v169 = vsel %vm134, %v122, 0
    %vm171 = vcmask 1044480
    %vm172 = vcmask 1045504
    %v173 = vsel %vm171, 4294967295, 65535
    %v174 = vsel %vm172, %v173, 0
    %v176 = vand.u32 %v132, %v174
    %178 = vmatprep.subr.bf16.mxu0 0
    %179 = vmatpush1.bf16.msra.mxu0 0
    %180 = vmatprep.subr.bf16.mxu0 0
    %181 = vmatpush1.bf16.msra.mxu0 0
    %182 = vmatprep.subr.bf16.mxu0 0
    %183 = vmatpush1.bf16.msra.mxu0 0
    %184 = vmatprep.subr.bf16.mxu0 0
    %185 = vmatpush1.bf16.msra.mxu0 0
    %186 = vmatprep.subr.bf16.mxu0 0
    %187 = vmatpush1.bf16.msra.mxu0 0
    %188 = vmatprep.subr.bf16.mxu0 0
    %189 = vmatpush1.bf16.msra.mxu0 0
    %190 = vmatprep.subr.bf16.mxu0 0
    %191 = vmatpush1.bf16.msra.mxu0 %v176
    %192 = vmatprep.subr.bf16.mxu0 0
    %193 = vmatpush1.bf16.msra.mxu0 %v131
    %194 = vmatprep.subr.bf16.mxu0 0
    %195 = vmatpush2.bf16.msra.mxu0 0
    %196 = vmatprep.subr.bf16.mxu0 0
    %197 = vmatpush2.bf16.msra.mxu0 0
    %198 = vmatprep.subr.bf16.mxu0 0
    %199 = vmatpush2.bf16.msra.mxu0 0
    %200 = vmatprep.subr.bf16.mxu0 0
    %201 = vmatpush2.bf16.msra.mxu0 0
    %202 = vmatprep.subr.bf16.mxu0 0
    %203 = vmatpush2.bf16.msra.mxu0 0
    %204 = vmatprep.subr.bf16.mxu0 0
    %205 = vmatpush2.bf16.msra.mxu0 0
    %206 = vmatprep.subr.bf16.mxu0 0
    %207 = vmatpush2.bf16.msra.mxu0 0
    %208 = vmatprep.subr.bf16.mxu0 0
    %209 = vmatpush2.bf16.msra.mxu0 0
    %210 = vmatprep.mubr.bf16.mxu0 0
    %211 = vmatmul.mubr.bf16.gmra.mxu0 %v136
    %v212 = vpop.f32.mrf.mxu0
    %v213 = vadd.f32 %v61, %v212
    %v214 = vpop.f32.mrf.mxu0
    %v215 = vpop.f32.mrf.mxu0
    %v216 = vadd.f32 %v61, %v215
    %v217 = vpop.f32.mrf.mxu0
    %218 = vmatprep.mubr.bf16.mxu0 0
    %219 = vmatmul.mubr.bf16.gmra.mxu0 %v139
    %v220 = vpop.f32.mrf.mxu0
    %v221 = vadd.f32 %v61, %v220
    %v222 = vpop.f32.mrf.mxu0
    %v223 = vpop.f32.mrf.mxu0
    %v224 = vadd.f32 %v61, %v223
    %v225 = vpop.f32.mrf.mxu0
    %226 = vmatprep.mubr.bf16.mxu0 0
    %227 = vmatmul.mubr.bf16.gmra.mxu0 %v142
    %v228 = vpop.f32.mrf.mxu0
    %v229 = vadd.f32 %v61, %v228
    %v230 = vpop.f32.mrf.mxu0
    %v231 = vpop.f32.mrf.mxu0
    %v232 = vadd.f32 %v61, %v231
    %v233 = vpop.f32.mrf.mxu0
    %234 = vmatprep.mubr.bf16.mxu0 0
    %235 = vmatmul.mubr.bf16.gmra.mxu0 %v145
    %v236 = vpop.f32.mrf.mxu0
    %v237 = vadd.f32 %v61, %v236
    %v238 = vpop.f32.mrf.mxu0
    %v239 = vpop.f32.mrf.mxu0
    %v240 = vadd.f32 %v61, %v239
    %v241 = vpop.f32.mrf.mxu0
    %242 = vmatprep.mubr.bf16.mxu0 0
    %243 = vmatmul.mubr.bf16.gmra.mxu0 %v148
    %v244 = vpop.f32.mrf.mxu0
    %v245 = vadd.f32 %v61, %v244
    %v246 = vpop.f32.mrf.mxu0
    %v247 = vpop.f32.mrf.mxu0
    %v248 = vadd.f32 %v61, %v247
    %v249 = vpop.f32.mrf.mxu0
    %250 = vmatprep.mubr.bf16.mxu0 0
    %251 = vmatmul.mubr.bf16.gmra.mxu0 %v151
    %v252 = vpop.f32.mrf.mxu0
    %v253 = vadd.f32 %v61, %v252
    %v254 = vpop.f32.mrf.mxu0
    %v255 = vpop.f32.mrf.mxu0
    %v256 = vadd.f32 %v61, %v255
    %v257 = vpop.f32.mrf.mxu0
    %258 = vmatprep.mubr.bf16.mxu0 0
    %259 = vmatmul.mubr.bf16.gmra.mxu0 %v154
    %v260 = vpop.f32.mrf.mxu0
    %v261 = vadd.f32 %v61, %v260
    %v262 = vpop.f32.mrf.mxu0
    %v263 = vpop.f32.mrf.mxu0
    %v264 = vadd.f32 %v61, %v263
    %v265 = vpop.f32.mrf.mxu0
    %266 = vmatprep.mubr.bf16.mxu0 0
    %267 = vmatmul.mubr.bf16.gmra.mxu0 %v157
    %v268 = vpop.f32.mrf.mxu0
    %v269 = vadd.f32 %v61, %v268
    %v270 = vpop.f32.mrf.mxu0
    %v271 = vpop.f32.mrf.mxu0
    %v272 = vadd.f32 %v61, %v271
    %v273 = vpop.f32.mrf.mxu0
    %274 = vmatprep.mubr.bf16.mxu0 0
    %275 = vmatmul.mubr.bf16.gmra.mxu0 %v160
    %v276 = vpop.f32.mrf.mxu0
    %v277 = vadd.f32 %v61, %v276
    %v278 = vpop.f32.mrf.mxu0
    %v279 = vpop.f32.mrf.mxu0
    %v280 = vadd.f32 %v61, %v279
    %v281 = vpop.f32.mrf.mxu0
    %282 = vmatprep.mubr.bf16.mxu0 0
    %283 = vmatmul.mubr.bf16.gmra.mxu0 %v163
    %v284 = vpop.f32.mrf.mxu0
    %v285 = vadd.f32 %v61, %v284
    %v286 = vpop.f32.mrf.mxu0
    %v287 = vpop.f32.mrf.mxu0
    %v288 = vadd.f32 %v61, %v287
    %v289 = vpop.f32.mrf.mxu0
    %290 = vmatprep.mubr.bf16.mxu0 0
    %291 = vmatmul.mubr.bf16.gmra.mxu0 %v166
    %v292 = vpop.f32.mrf.mxu0
    %v293 = vadd.f32 %v61, %v292
    %v294 = vpop.f32.mrf.mxu0
    %v295 = vpop.f32.mrf.mxu0
    %v296 = vadd.f32 %v61, %v295
    %v297 = vpop.f32.mrf.mxu0
    %298 = vmatprep.mubr.bf16.mxu0 0
    %299 = vmatmul.mubr.bf16.gmra.mxu0 %v169
    %v300 = vpop.f32.mrf.mxu0
    %v301 = vadd.f32 %v61, %v300
    %v302 = vpop.f32.mrf.mxu0
    %v303 = vpop.f32.mrf.mxu0
    %v304 = vadd.f32 %v61, %v303
    %v305 = vpop.f32.mrf.mxu0
    %306 = vdwg.mxu0
    %v307 = vmax.f32 %v213, 0.0
    %v308 = vmax.f32 %v216, 0.0
    %v309 = vmax.f32 %v221, 0.0
    %v310 = vmax.f32 %v224, 0.0
    %v311 = vmax.f32 %v229, 0.0
    %v312 = vmax.f32 %v232, 0.0
    %v313 = vmax.f32 %v237, 0.0
    %v314 = vmax.f32 %v240, 0.0
    %v315 = vmax.f32 %v245, 0.0
    %v316 = vmax.f32 %v248, 0.0
    %v317 = vmax.f32 %v253, 0.0
    %v318 = vmax.f32 %v256, 0.0
    %v319 = vmax.f32 %v261, 0.0
    %v320 = vmax.f32 %v264, 0.0
    %v321 = vmax.f32 %v269, 0.0
    %v322 = vmax.f32 %v272, 0.0
    %v323 = vmax.f32 %v277, 0.0
    %v324 = vmax.f32 %v280, 0.0
    %v325 = vmax.f32 %v285, 0.0
    %v326 = vmax.f32 %v288, 0.0
    %v327 = vmax.f32 %v293, 0.0
    %v328 = vmax.f32 %v296, 0.0
    %v329 = vmax.f32 %v301, 0.0
    %v330 = vmax.f32 %v304, 0.0
    %v331 = vmax.f32 %v307, %v313
    %v332 = vmax.f32 %v308, %v314
    %v333 = vmax.f32 %v309, %v315
    %v334 = vmax.f32 %v310, %v316
    %v335 = vmax.f32 %v311, %v317
    %v336 = vmax.f32 %v312, %v318
    %v337 = vmax.f32 %v319, %v325
    %v338 = vmax.f32 %v320, %v326
    %v339 = vmax.f32 %v321, %v327
    %v340 = vmax.f32 %v322, %v328
    %v341 = vmax.f32 %v323, %v329
    %v342 = vmax.f32 %v324, %v330
    %v343 = vmax.f32 %v331, %v337
    %v344 = vmax.f32 %v332, %v338
    %v345 = vmax.f32 %v333, %v339
    %v346 = vmax.f32 %v334, %v340
    %v347 = vmax.f32 %v335, %v341
    %v348 = vmax.f32 %v336, %v342
    %vm349 = vcmask 91136
    %350 = vst.msk [vmem:[#allocation2] sm:$0x3] %vm349, %v343
    %v353 = vunpack.c.l.s4 1983009808
    %v354 = vunpack.c.0.s8 %v353
    %v355 = vlaneseq
    %v356 = vshrl.u32 %v355, 7
    %v357 = vsub.s32 %v354, %v356
    %v358 = vrot.slane %v343, %v357
    %v359 = vcombine.high %v358, %v358
    %360 = vrot.lane.b32.xlu0 %v359, 12
    %v361 = vpop.permute.xlu0 %360
    %vm363 = vcmask 189536
    %364 = vst.msk [vmem:[#allocation2] sm:$0x3] %vm363, %v361
    %v365 = vcombine.high %v343, %v343
    %v367 = vunpack.c.l.s4 1983009808
    %v368 = vunpack.c.0.s8 %v367
    %v369 = vlaneseq
    %v370 = vshrl.u32 %v369, 7
    %v371 = vsub.s32 %v368, %v370
    %v372 = vrot.slane %v365, %v371
    %373 = vrot.lane.b32.xlu0 %v372, 24
    %v374 = vpop.permute.xlu0 %373
    %vm376 = vcmask 287936
    %377 = vst.msk [vmem:[#allocation2] sm:$0x3] %vm376, %v374
    %v378 = vcombine.high %v372, %v372
    %379 = vrot.lane.b32.xlu0 %v378, 36
    %v380 = vpop.permute.xlu0 %379
    %vm382 = vcmask 386336
    %383 = vst.msk [vmem:[#allocation2] sm:$0x3] %vm382, %v380
    %v386 = vunpack.c.l.s4 1983009808
    %v387 = vunpack.c.0.s8 %v386
    %v388 = vlaneseq
    %v389 = vshrl.u32 %v388, 7
    %v390 = vsub.s32 %v387, %v389
    %v391 = vrot.slane %v344, %v390
    %392 = vrot.lane.b32.xlu0 %v391, 48
    %v393 = vpop.permute.xlu0 %392
    %vm395 = vcmask 484736
    %396 = vst.msk [vmem:[#allocation2] sm:$0x3] %vm395, %v393
    %v397 = vcombine.high %v391, %v391
    %398 = vrot.lane.b32.xlu0 %v397, 60
    %v399 = vpop.permute.xlu0 %398
    %vm401 = vcmask 583136
    %402 = vst.msk [vmem:[#allocation2] sm:$0x3] %vm401, %v399
    %v403 = vcombine.high %v344, %v344
    %v405 = vunpack.c.l.s4 1983009808
    %v406 = vunpack.c.0.s8 %v405
    %v407 = vlaneseq
    %v408 = vshrl.u32 %v407, 7
    %v409 = vsub.s32 %v406, %v408
    %v410 = vrot.slane %v403, %v409
    %411 = vrot.lane.b32.xlu0 %v410, 72
    %v412 = vpop.permute.xlu0 %411
    %vm414 = vcmask 681536
    %415 = vst.msk [vmem:[#allocation2] sm:$0x3] %vm414, %v412
    %v416 = vcombine.high %v410, %v410
    %417 = vrot.lane.b32.xlu0 %v416, 84
    %v418 = vpop.permute.xlu0 %417
    %vm420 = vcmask 779936
    %421 = vst.msk [vmem:[#allocation2] sm:$0x3] %vm420, %v418
    %v424 = vunpack.c.l.s4 1983009808
    %v425 = vunpack.c.0.s8 %v424
    %v426 = vlaneseq
    %v427 = vshrl.u32 %v426, 7
    %v428 = vsub.s32 %v425, %v427
    %v429 = vrot.slane %v345, %v428
    %430 = vrot.lane.b32.xlu0 %v429, 96
    %v431 = vpop.permute.xlu0 %430
    %vm433 = vcmask 878336
    %434 = vst.msk [vmem:[#allocation2] sm:$0x3] %vm433, %v431
    %v435 = vcombine.high %v429, %v429
    %436 = vrot.lane.b32.xlu0 %v435, 108
    %v437 = vpop.permute.xlu0 %436
    %vm439 = vcmask 976736
    %440 = vst.msk [vmem:[#allocation2] sm:$0x3] %vm439, %v437
    %v441 = vcombine.high %v345, %v345
    %v443 = vunpack.c.l.s4 1983009808
    %v444 = vunpack.c.0.s8 %v443
    %v445 = vlaneseq
    %v446 = vshrl.u32 %v445, 7
    %v447 = vsub.s32 %v444, %v446
    %v448 = vrot.slane %v441, %v447
    %449 = vrot.lane.b32.xlu0 %v448, 120
    %v450 = vpop.permute.xlu0 %449
    %v451 = vrot.slane %v450, 6
    %vm452 = vcmask 982016
    %v453 = vsel %vm452, %v451, %v450
    %vm455 = vcmask 1042368
    %vm456 = vcmask 27650
    %vm457 = vmor %vm456, %vm455
    %458 = vst.msk [vmem:[#allocation2] sm:$0xf] %vm457, %v453
    %v459 = vcombine.high %v448, %v448
    %460 = vrot.lane.b32.xlu0 %v459, 4
    %v461 = vpop.permute.xlu0 %460
    %vm463 = vcmask 123936
    %464 = vst.msk [vmem:[#allocation2 + $0x2] sm:$0x3] %vm463, %v461
    %v467 = vunpack.c.l.s4 1983009808
    %v468 = vunpack.c.0.s8 %v467
    %v469 = vlaneseq
    %v470 = vshrl.u32 %v469, 7
    %v471 = vsub.s32 %v468, %v470
    %v472 = vrot.slane %v346, %v471
    %473 = vrot.lane.b32.xlu0 %v472, 16
    %v474 = vpop.permute.xlu0 %473
    %vm476 = vcmask 222336
    %477 = vst.msk [vmem:[#allocation2 + $0x2] sm:$0x3] %vm476, %v474
    %v478 = vcombine.high %v472, %v472
    %479 = vrot.lane.b32.xlu0 %v478, 28
    %v480 = vpop.permute.xlu0 %479
    %vm482 = vcmask 320736
    %483 = vst.msk [vmem:[#allocation2 + $0x2] sm:$0x3] %vm482, %v480
    %v484 = vcombine.high %v346, %v346
    %v486 = vunpack.c.l.s4 1983009808
    %v487 = vunpack.c.0.s8 %v486
    %v488 = vlaneseq
    %v489 = vshrl.u32 %v488, 7
    %v490 = vsub.s32 %v487, %v489
    %v491 = vrot.slane %v484, %v490
    %492 = vrot.lane.b32.xlu0 %v491, 40
    %v493 = vpop.permute.xlu0 %492
    %vm495 = vcmask 419136
    %496 = vst.msk [vmem:[#allocation2 + $0x2] sm:$0x3] %vm495, %v493
    %v497 = vcombine.high %v491, %v491
    %498 = vrot.lane.b32.xlu0 %v497, 52
    %v499 = vpop.permute.xlu0 %498
    %vm501 = vcmask 517536
    %502 = vst.msk [vmem:[#allocation2 + $0x2] sm:$0x3] %vm501, %v499
    %v505 = vunpack.c.l.s4 1983009808
    %v506 = vunpack.c.0.s8 %v505
    %v507 = vlaneseq
    %v508 = vshrl.u32 %v507, 7
    %v509 = vsub.s32 %v506, %v508
    %v510 = vrot.slane %v347, %v509
    %511 = vrot.lane.b32.xlu0 %v510, 64
    %v512 = vpop.permute.xlu0 %511
    %vm514 = vcmask 615936
    %515 = vst.msk [vmem:[#allocation2 + $0x2] sm:$0x3] %vm514, %v512
    %v516 = vcombine.high %v510, %v510
    %517 = vrot.lane.b32.xlu0 %v516, 76
    %v518 = vpop.permute.xlu0 %517
    %vm520 = vcmask 714336
    %521 = vst.msk [vmem:[#allocation2 + $0x2] sm:$0x3] %vm520, %v518
    %v522 = vcombine.high %v347, %v347
    %v524 = vunpack.c.l.s4 1983009808
    %v525 = vunpack.c.0.s8 %v524
    %v526 = vlaneseq
    %v527 = vshrl.u32 %v526, 7
    %v528 = vsub.s32 %v525, %v527
    %v529 = vrot.slane %v522, %v528
    %530 = vrot.lane.b32.xlu0 %v529, 88
    %v531 = vpop.permute.xlu0 %530
    %vm533 = vcmask 812736
    %534 = vst.msk [vmem:[#allocation2 + $0x2] sm:$0x3] %vm533, %v531
    %v535 = vcombine.high %v529, %v529
    %536 = vrot.lane.b32.xlu0 %v535, 100
    %v537 = vpop.permute.xlu0 %536
    %vm539 = vcmask 911136
    %540 = vst.msk [vmem:[#allocation2 + $0x2] sm:$0x3] %vm539, %v537
    %v543 = vunpack.c.l.s4 1983009808
    %v544 = vunpack.c.0.s8 %v543
    %v545 = vlaneseq
    %v546 = vshrl.u32 %v545, 7
    %v547 = vsub.s32 %v544, %v546
    %v548 = vrot.slane %v348, %v547
    %549 = vrot.lane.b32.xlu0 %v548, 112
    %v550 = vpop.permute.xlu0 %549
    %vm552 = vcmask 1009536
    %553 = vst.msk [vmem:[#allocation2 + $0x2] sm:$0x3] %vm552, %v550
    %v554 = vcombine.high %v548, %v548
    %555 = vrot.lane.b32.xlu0 %v554, 124
    %v556 = vpop.permute.xlu0 %555
    %v557 = vrot.slane %v556, 6
    %vm558 = vcmask 1014784
    %v559 = vsel %vm558, %v557, %v556
    %vm561 = vcmask 1042400
    %vm562 = vcmask 60418
    %vm563 = vmor %vm562, %vm561
    %564 = vst.msk [vmem:[#allocation2 + $0x2] sm:$0xf] %vm563, %v559
    %v565 = vcombine.high %v348, %v348
    %v567 = vunpack.c.l.s4 1983009808
    %v568 = vunpack.c.0.s8 %v567
    %v569 = vlaneseq
    %v570 = vshrl.u32 %v569, 7
    %v571 = vsub.s32 %v568, %v570
    %v572 = vrot.slane %v565, %v571
    %573 = vrot.lane.b32.xlu0 %v572, 8
    %v574 = vpop.permute.xlu0 %573
    %vm576 = vcmask 156736
    %577 = vst.msk [vmem:[#allocation2 + $0x4] sm:$0x3] %vm576, %v574
    %v578 = vcombine.high %v572, %v572
    %579 = vrot.lane.b32.xlu0 %v578, 20
    %v580 = vpop.permute.xlu0 %579
    %vm582 = vcmask 255136
    %583 = vst.msk [vmem:[#allocation2 + $0x4] sm:$0x3] %vm582, %v580
    %v584 = vld [vmem:[#allocation2] sm:$0x3f]
    %v586 = vcombine.high %v584, %v584
    %v588 = vunpack.c.l.s4 1983009808
    %v589 = vunpack.c.0.s8 %v588
    %v590 = vlaneseq
    %v591 = vshrl.u32 %v590, 7
    %v592 = vsub.s32 %v589, %v591
    %v593 = vrot.slane %v584, %v592
    %v595 = vunpack.c.l.s4 1983009808
    %v596 = vunpack.c.0.s8 %v595
    %v597 = vlaneseq
    %v598 = vshrl.u32 %v597, 7
    %v599 = vsub.s32 %v596, %v598
    %v600 = vrot.slane %v586, %v599
    %v601 = vcombine.high %v593, %v593
    %v605 = vpack.c.bf16 %v593, %v593
    %v606 = vpack.c.bf16 %v601, %v601
    %v607 = vpack.c.bf16 %v600, %v600
    %v608 = vld [vmem:[%s3] sm:$0xf]
    %v609 = vld [vmem:[%s3 + $0x4] sm:$0xf]
    %v610 = vld [vmem:[%s3 + $0x8] sm:$0xf]
    %v611 = vld [vmem:[%s3 + $0xc] sm:$0xf]
    %v612 = vld [vmem:[%s3 + $0x10] sm:$0xf]
    %v613 = vld [vmem:[%s3 + $0x14] sm:$0xf]
    %v614 = vld [vmem:[%s3 + $0x18] sm:$0xf]
    %v615 = vld [vmem:[%s3 + $0x1c] sm:$0xf]
    %v616 = vld [vmem:[%s3 + $0x20] sm:$0xf]
    %v617 = vld [vmem:[%s3 + $0x24] sm:$0xf]
    %v618 = vld [vmem:[%s3 + $0x28] sm:$0xf]
    %v619 = vld [vmem:[%s3 + $0x2c] sm:$0xf]
    %v620 = vld [vmem:[%s3 + $0x30] sm:$0xf]
    %v621 = vld [vmem:[%s3 + $0x34] sm:$0xf]
    %v622 = vld [vmem:[%s3 + $0x38] sm:$0xf]
    %v623 = vld [vmem:[%s3 + $0x3c] sm:$0xf]
    %v624 = vld [vmem:[%s3 + $0x40] sm:$0xf]
    %v625 = vld [vmem:[%s3 + $0x44] sm:$0xf]
    %v626 = vld [vmem:[%s3 + $0x48] sm:$0xf]
    %v627 = vld [vmem:[%s3 + $0x4c] sm:$0xf]
    %v628 = vld [vmem:[%s3 + $0x50] sm:$0xf]
    %v629 = vld [vmem:[%s3 + $0x54] sm:$0xf]
    %v630 = vld [vmem:[%s3 + $0x58] sm:$0xf]
    %v631 = vld [vmem:[%s3 + $0x5c] sm:$0xf]
    %v632 = vld [vmem:[%s3 + $0x60] sm:$0xf]
    %v633 = vld [vmem:[%s3 + $0x64] sm:$0xf]
    %v634 = vld [vmem:[%s3 + $0x68] sm:$0xf]
    %v635 = vld [vmem:[%s3 + $0x6c] sm:$0xf]
    %v636 = vld [vmem:[%s3 + $0x70] sm:$0xf]
    %v637 = vld [vmem:[%s3 + $0x74] sm:$0xf]
    %v638 = vld [vmem:[%s3 + $0x78] sm:$0xf]
    %v639 = vld [vmem:[%s3 + $0x7c] sm:$0xf]
    %v640 = vld [vmem:[%s3 + $0x80] sm:$0xf]
    %v641 = vld [vmem:[%s3 + $0x84] sm:$0xf]
    %v642 = vld [vmem:[%s3 + $0x88] sm:$0xf]
    %v643 = vld [vmem:[%s3 + $0x8c] sm:$0xf]
    %v644 = vld [vmem:[%s4] sm:$0x1]
    %v646 = vlaneseq
    %v647 = vshrl.u32 %v646, 7
    %v648 = vsub.s32 0, %v647
    %v649 = vrot.slane %v644, %v648
    %v687 = vunpack.c.l.b16 %v608
    %v688 = vunpack.c.l.b16 %v609
    %v689 = vunpack.c.l.b16 %v610
    %v690 = vunpack.c.l.b16 %v611
    %v691 = vunpack.c.l.b16 %v612
    %v692 = vunpack.c.l.b16 %v613
    %v693 = vunpack.c.l.b16 %v614
    %v694 = vunpack.c.l.b16 %v615
    %v695 = vunpack.c.l.b16 %v616
    %v696 = vunpack.c.l.b16 %v617
    %v697 = vunpack.c.l.b16 %v618
    %v698 = vunpack.c.l.b16 %v619
    %v699 = vunpack.c.l.b16 %v620
    %v700 = vunpack.c.l.b16 %v621
    %v701 = vunpack.c.l.b16 %v622
    %v702 = vunpack.c.l.b16 %v623
    %v703 = vunpack.c.l.b16 %v624
    %v704 = vunpack.c.l.b16 %v625
    %v705 = vunpack.c.l.b16 %v626
    %v706 = vunpack.c.l.b16 %v627
    %v707 = vunpack.c.l.b16 %v628
    %v708 = vunpack.c.l.b16 %v629
    %v709 = vunpack.c.l.b16 %v630
    %v710 = vunpack.c.l.b16 %v631
    %v711 = vunpack.c.l.b16 %v632
    %v712 = vunpack.c.l.b16 %v633
    %v713 = vunpack.c.l.b16 %v634
    %v714 = vunpack.c.l.b16 %v635
    %v715 = vunpack.c.l.b16 %v636
    %v716 = vunpack.c.l.b16 %v637
    %v717 = vunpack.c.l.b16 %v638
    %v718 = vunpack.c.l.b16 %v639
    %v719 = vunpack.c.l.b16 %v640
    %v720 = vunpack.c.l.b16 %v641
    %v721 = vunpack.c.l.b16 %v642
    %v722 = vunpack.c.l.b16 %v643
    %v723 = vpack.c.b16 %v688, %v687
    %v724 = vpack.c.b16 %v690, %v689
    %v725 = vpack.c.b16 %v692, %v691
    %v726 = vpack.c.b16 %v694, %v693
    %v727 = vpack.c.b16 %v696, %v695
    %v728 = vpack.c.b16 %v698, %v697
    %v729 = vpack.c.b16 %v700, %v699
    %v730 = vpack.c.b16 %v702, %v701
    %v731 = vpack.c.b16 %v704, %v703
    %v732 = vpack.c.b16 %v706, %v705
    %v733 = vpack.c.b16 %v708, %v707
    %v734 = vpack.c.b16 %v710, %v709
    %v735 = vpack.c.b16 %v712, %v711
    %v736 = vpack.c.b16 %v714, %v713
    %v737 = vpack.c.b16 %v716, %v715
    %v738 = vpack.c.b16 %v718, %v717
    %v739 = vpack.c.b16 %v720, %v719
    %v740 = vpack.c.b16 %v722, %v721
    %vm759 = vcmask 261120
    %v761 = vsel %vm759, %v607, 0
    %763 = vmatprep.subr.bf16.mxu0 0
    %764 = vmatpush1.bf16.msra.mxu0 %v730
    %765 = vmatprep.subr.bf16.mxu0 0
    %766 = vmatpush1.bf16.msra.mxu0 %v729
    %767 = vmatprep.subr.bf16.mxu0 0
    %768 = vmatpush1.bf16.msra.mxu0 %v728
    %769 = vmatprep.subr.bf16.mxu0 0
    %770 = vmatpush1.bf16.msra.mxu0 %v727
    %771 = vmatprep.subr.bf16.mxu0 0
    %772 = vmatpush1.bf16.msra.mxu0 %v726
    %773 = vmatprep.subr.bf16.mxu0 0
    %774 = vmatpush1.bf16.msra.mxu0 %v725
    %775 = vmatprep.subr.bf16.mxu0 0
    %776 = vmatpush1.bf16.msra.mxu0 %v724
    %777 = vmatprep.subr.bf16.mxu0 0
    %778 = vmatpush1.bf16.msra.mxu0 %v723
    %779 = vmatprep.subr.bf16.mxu0 0
    %780 = vmatpush2.bf16.msra.mxu0 %v738
    %781 = vmatprep.subr.bf16.mxu0 0
    %782 = vmatpush2.bf16.msra.mxu0 %v737
    %783 = vmatprep.subr.bf16.mxu0 0
    %784 = vmatpush2.bf16.msra.mxu0 %v736
    %785 = vmatprep.subr.bf16.mxu0 0
    %786 = vmatpush2.bf16.msra.mxu0 %v735
    %787 = vmatprep.subr.bf16.mxu0 0
    %788 = vmatpush2.bf16.msra.mxu0 %v734
    %789 = vmatprep.subr.bf16.mxu0 0
    %790 = vmatpush2.bf16.msra.mxu0 %v733
    %791 = vmatprep.subr.bf16.mxu0 0
    %792 = vmatpush2.bf16.msra.mxu0 %v732
    %793 = vmatprep.subr.bf16.mxu0 0
    %794 = vmatpush2.bf16.msra.mxu0 %v731
    %795 = vmatprep.mubr.bf16.mxu0 %v606
    %796 = vmatmul.mubr.bf16.gmra.mxu0 %v605
    %v797 = vpop.f32.mrf.mxu0
    %v798 = vadd.f32 %v649, %v797
    %v799 = vpop.f32.mrf.mxu0
    %v800 = vpop.f32.mrf.mxu0
    %v801 = vpop.f32.mrf.mxu0
    %802 = vdwg.mxu0
    %803 = vmatprep.subr.bf16.mxu0 0
    %804 = vmatpush1.bf16.msra.mxu0 0
    %805 = vmatprep.subr.bf16.mxu0 0
    %806 = vmatpush1.bf16.msra.mxu0 0
    %807 = vmatprep.subr.bf16.mxu0 0
    %808 = vmatpush1.bf16.msra.mxu0 0
    %809 = vmatprep.subr.bf16.mxu0 0
    %810 = vmatpush1.bf16.msra.mxu0 0
    %811 = vmatprep.subr.bf16.mxu0 0
    %812 = vmatpush1.bf16.msra.mxu0 0
    %813 = vmatprep.subr.bf16.mxu0 0
    %814 = vmatpush1.bf16.msra.mxu0 0
    %815 = vmatprep.subr.bf16.mxu0 0
    %816 = vmatpush1.bf16.msra.mxu0 %v740
    %817 = vmatprep.subr.bf16.mxu0 0
    %818 = vmatpush1.bf16.msra.mxu0 %v739
    %819 = vmatprep.subr.bf16.mxu0 0
    %820 = vmatpush2.bf16.msra.mxu0 0
    %821 = vmatprep.subr.bf16.mxu0 0
    %822 = vmatpush2.bf16.msra.mxu0 0
    %823 = vmatprep.subr.bf16.mxu0 0
    %824 = vmatpush2.bf16.msra.mxu0 0
    %825 = vmatprep.subr.bf16.mxu0 0
    %826 = vmatpush2.bf16.msra.mxu0 0
    %827 = vmatprep.subr.bf16.mxu0 0
    %828 = vmatpush2.bf16.msra.mxu0 0
    %829 = vmatprep.subr.bf16.mxu0 0
    %830 = vmatpush2.bf16.msra.mxu0 0
    %831 = vmatprep.subr.bf16.mxu0 0
    %832 = vmatpush2.bf16.msra.mxu0 0
    %833 = vmatprep.subr.bf16.mxu0 0
    %834 = vmatpush2.bf16.msra.mxu0 0
    %835 = vmatprep.mubr.bf16.mxu0 0
    %836 = vmatmul.mubr.bf16.gmra.mxu0 %v761
    %v837 = vpop.f32.mrf.mxu0
    %v838 = vadd.f32 %v798, %v837
    %v839 = vpop.f32.mrf.mxu0
    %v840 = vpop.f32.mrf.mxu0
    %v841 = vpop.f32.mrf.mxu0
    %842 = vdwg.mxu0
    %v843 = vmax.f32 %v838, 0.0
    %v844 = vpack.c.bf16 %v843, %v843
    %v845 = vld [vmem:[%s5] sm:$0xf]
    %v846 = vld [vmem:[%s5 + $0x4] sm:$0xf]
    %v847 = vld [vmem:[%s5 + $0x8] sm:$0xf]
    %v848 = vld [vmem:[%s5 + $0xc] sm:$0xf]
    %v849 = vld [vmem:[%s5 + $0x10] sm:$0xf]
    %v850 = vld [vmem:[%s5 + $0x14] sm:$0xf]
    %v851 = vld [vmem:[%s5 + $0x18] sm:$0xf]
    %v852 = vld [vmem:[%s5 + $0x1c] sm:$0xf]
    %v853 = vld [vmem:[%s5 + $0x20] sm:$0xf]
    %v854 = vld [vmem:[%s5 + $0x24] sm:$0xf]
    %v855 = vld [vmem:[%s5 + $0x28] sm:$0xf]
    %v856 = vld [vmem:[%s5 + $0x2c] sm:$0xf]
    %v857 = vld [vmem:[%s5 + $0x30] sm:$0xf]
    %v858 = vld [vmem:[%s5 + $0x34] sm:$0xf]
    %v859 = vld [vmem:[%s5 + $0x38] sm:$0xf]
    %v860 = vld [vmem:[%s5 + $0x3c] sm:$0xf]
    %v861 = vld [vmem:[%s6] sm:$0x1]
    %v863 = vlaneseq
    %v864 = vshrl.u32 %v863, 7
    %v865 = vsub.s32 0, %v864
    %v866 = vrot.slane %v861, %v865
    %v884 = vunpack.c.l.b16 %v845
    %v885 = vunpack.c.l.b16 %v846
    %v886 = vunpack.c.l.b16 %v847
    %v887 = vunpack.c.l.b16 %v848
    %v888 = vunpack.c.l.b16 %v849
    %v889 = vunpack.c.l.b16 %v850
    %v890 = vunpack.c.l.b16 %v851
    %v891 = vunpack.c.l.b16 %v852
    %v892 = vunpack.c.l.b16 %v853
    %v893 = vunpack.c.l.b16 %v854
    %v894 = vunpack.c.l.b16 %v855
    %v895 = vunpack.c.l.b16 %v856
    %v896 = vunpack.c.l.b16 %v857
    %v897 = vunpack.c.l.b16 %v858
    %v898 = vunpack.c.l.b16 %v859
    %v899 = vunpack.c.l.b16 %v860
    %v900 = vpack.c.b16 %v885, %v884
    %v901 = vpack.c.b16 %v887, %v886
    %v902 = vpack.c.b16 %v889, %v888
    %v903 = vpack.c.b16 %v891, %v890
    %v904 = vpack.c.b16 %v893, %v892
    %v905 = vpack.c.b16 %v895, %v894
    %v906 = vpack.c.b16 %v897, %v896
    %v907 = vpack.c.b16 %v899, %v898
    %916 = vmatprep.subr.bf16.mxu0 0
    %917 = vmatpush1.bf16.msra.mxu0 %v907
    %918 = vmatprep.subr.bf16.mxu0 0
    %919 = vmatpush1.bf16.msra.mxu0 %v906
    %920 = vmatprep.subr.bf16.mxu0 0
    %921 = vmatpush1.bf16.msra.mxu0 %v905
    %922 = vmatprep.subr.bf16.mxu0 0
    %923 = vmatpush1.bf16.msra.mxu0 %v904
    %924 = vmatprep.subr.bf16.mxu0 0
    %925 = vmatpush1.bf16.msra.mxu0 %v903
    %926 = vmatprep.subr.bf16.mxu0 0
    %927 = vmatpush1.bf16.msra.mxu0 %v902
    %928 = vmatprep.subr.bf16.mxu0 0
    %929 = vmatpush1.bf16.msra.mxu0 %v901
    %930 = vmatprep.subr.bf16.mxu0 0
    %931 = vmatpush1.bf16.msra.mxu0 %v900
    %932 = vmatprep.subr.bf16.mxu0 0
    %933 = vmatpush2.bf16.msra.mxu0 0
    %934 = vmatprep.subr.bf16.mxu0 0
    %935 = vmatpush2.bf16.msra.mxu0 0
    %936 = vmatprep.subr.bf16.mxu0 0
    %937 = vmatpush2.bf16.msra.mxu0 0
    %938 = vmatprep.subr.bf16.mxu0 0
    %939 = vmatpush2.bf16.msra.mxu0 0
    %940 = vmatprep.subr.bf16.mxu0 0
    %941 = vmatpush2.bf16.msra.mxu0 0
    %942 = vmatprep.subr.bf16.mxu0 0
    %943 = vmatpush2.bf16.msra.mxu0 0
    %944 = vmatprep.subr.bf16.mxu0 0
    %945 = vmatpush2.bf16.msra.mxu0 0
    %946 = vmatprep.subr.bf16.mxu0 0
    %947 = vmatpush2.bf16.msra.mxu0 0
    %948 = vmatprep.mubr.bf16.mxu0 0
    %949 = vmatmul.mubr.bf16.gmra.mxu0 %v844
    %v950 = vpop.f32.mrf.mxu0
    %v951 = vadd.f32 %v866, %v950
    %v952 = vpop.f32.mrf.mxu0
    %v953 = vpop.f32.mrf.mxu0
    %v954 = vpop.f32.mrf.mxu0
    %955 = vdwg.mxu0
    %vm956 = vcmask 74752
    %957 = vst.msk [vmem:[#allocation3] sm:$0x3] %vm956, %v951
    // Predicated region
    $region30: #{net2_forward.1} parent=1 // pred_check
      _
    $region31: #{net2_forward.1} parent=1 // pred_check_branch
      %959 = sbr.rel (0) target = $region33
    $region32: #{net2_forward.1} parent=1 // pred_region
      %s961 = ssub.s32 32, 32
      %962 = vsyncadd [#allocation4], %s961
      %s964 = sshll.u32 [#allocation3], 4
      %s965 = int_to_ptr.vmem [resolvable:$true] %s964
      %967 = dma.vmem_to_hbm [thread:$0]  %s965, 32, %s7, [#allocation4]
    $region33: #{net2_forward.1} parent=1 // pred_fallthru
      _
    // Predicated region
    $region34: #{net2_forward.1} parent=1 // pred_check
      _
    $region35: #{net2_forward.1} parent=1 // pred_check_branch
      %969 = sbr.rel (0) target = $region37
    $region36: #{net2_forward.1} parent=1 // pred_region
      %970 = dma.done [#allocation4], 32
    $region37: #{net2_forward.1} parent=1 // pred_fallthru
      _
    %971 = vsyncpa [#allocation4], 1

</llo_original>
